<compile_context>
chip_gen: v7x
topology: tpu7x:2x2x1
jax: 0.10.0
libtpu: 0.0.40
codegen_flags: <defaults>
</compile_context>

<pallas_src>
import jax
import jax.numpy as jnp
from jax import lax
from jax.experimental import pallas as pl
from jax.experimental.pallas import tpu as pltpu


# ----------------------------------------------------------------------------
# Small shapes consistent with the DeepSeek-V3 baseline config
# (vocab_size=128, dim=d_model=32, batch=2, seq=8)
# ----------------------------------------------------------------------------
VOCAB = 128
DIM = 32
BATCH = 2
SEQ = 8


# ----------------------------------------------------------------------------
# Pallas kernel: scalar-prefetch (SMEM ids) dynamic-slice row gather
# ----------------------------------------------------------------------------
def _embedding_kernel(ids_ref, w_ref, o_ref):
    # ids_ref: (N,)   int32 token ids, SMEM (scalar-prefetched)
    # w_ref:   (V, D) f32 embedding table, VMEM (whole table resident)
    # o_ref:   (N, D) f32 gathered embeddings, VMEM
    n = o_ref.shape[0]

    def body(i, carry):
        tok = ids_ref[i]                                   # cheap SMEM scalar read
        o_ref[pl.ds(i, 1), :] = w_ref[pl.ds(tok, 1), :]    # one-row vld -> vst
        return carry

    # Fully unrolled: static trip count, gives the LLO scheduler the whole
    # load/store stream in one basic block.
    lax.fori_loop(0, n, body, 0, unroll=True)


def parallel_embedding_forward(x, weight):
    """y = embedding(x, weight); x: int ids of any shape, weight: (vocab, dim)."""
    orig_shape = x.shape
    n = int(x.size)
    _, d = weight.shape
    ids = x.reshape(n).astype(jnp.int32)                   # 1-D -> SMEM prefetch
    out = pl.pallas_call(
        _embedding_kernel,
        out_shape=jax.ShapeDtypeStruct((n, d), weight.dtype),
        grid_spec=pltpu.PrefetchScalarGridSpec(
            num_scalar_prefetch=1,
            grid=(1,),                                     # single grid step
            in_specs=[pl.BlockSpec(memory_space=pltpu.MemorySpace.VMEM)],
            out_specs=pl.BlockSpec(memory_space=pltpu.MemorySpace.VMEM),
        ),
        compiler_params=pltpu.CompilerParams(
            dimension_semantics=("arbitrary",)),
    )(ids, weight)
    return out.reshape(*orig_shape, d)


# ----------------------------------------------------------------------------
if __name__ == "__main__":
    master = jax.random.PRNGKey(0)
    k_w, k_x = jax.random.split(master)

    # nn.Parameter(torch.empty(...)) is uninitialized in the reference; use a
    # deterministic normal init here.  (bf16 tables are recommended on
    # v6e/v7x for the real model; f32 kept here to match the torch default.)
    weight = jax.random.normal(k_w, (VOCAB, DIM), jnp.float32)
    tokens = jax.random.randint(k_x, (BATCH, SEQ), 0, VOCAB, jnp.int32)

    y = jax.jit(parallel_embedding_forward)(tokens, weight)
    y = jax.block_until_ready(y)

    assert y.shape == (BATCH, SEQ, DIM)
    ref = weight[tokens]                       # plain-JAX reference gather
    assert bool(jnp.all(jnp.isfinite(y)))
    assert bool(jnp.array_equal(y, ref))       # direct gather is bit-exact
    print("KERNEL_OK")
</pallas_src>

<mosaic_0001>
module attributes {stable_mosaic.version = 11 : i64} {
  func.func @_embedding_kernel(%arg0: i32, %arg1: memref<16xi32, #tpu.memory_space<smem>>, %arg2: memref<128x32xf32, #tpu.memory_space<vmem>>, %arg3: memref<16x32xf32, #tpu.memory_space<vmem>>) attributes {dimension_semantics = [#tpu.dimension_semantics<arbitrary>], iteration_bounds = array<i64: 1>, scalar_prefetch = 1 : i64, scratch_operands = 0 : i64, tpu.core_type = #tpu.core_type<tc>, window_params = [{pipeline_mode = #tpu.pipeline_mode<synchronous>, transform_indices = @transform_0, window_bounds = array<i64: 128, 32>}, {pipeline_mode = #tpu.pipeline_mode<synchronous>, transform_indices = @transform_1, window_bounds = array<i64: 16, 32>}]} {
    %c0_i32 = arith.constant 0 : i32
    %0 = arith.index_cast %c0_i32 : i32 to index
    %1 = memref.load %arg1[%0] : memref<16xi32, #tpu.memory_space<smem>>
    %2 = arith.index_cast %1 : i32 to index
    %c0 = arith.constant 0 : index
    %3 = vector.load %arg2[%2, %c0] : memref<128x32xf32, #tpu.memory_space<vmem>>, vector<1x32xf32>
    %4 = arith.index_cast %c0_i32 : i32 to index
    %c0_0 = arith.constant 0 : index
    %5 = vector.load %arg3[%4, %c0_0] : memref<16x32xf32, #tpu.memory_space<vmem>>, vector<1x32xf32>
    tpu.vector_store %arg3[%4, %c0_0], %3 {strides = array<i32>} : memref<16x32xf32, #tpu.memory_space<vmem>>, vector<1x32xf32>,
    %c1_i32 = arith.constant 1 : i32
    %6 = arith.index_cast %c1_i32 : i32 to index
    %7 = memref.load %arg1[%6] : memref<16xi32, #tpu.memory_space<smem>>
    %8 = arith.index_cast %7 : i32 to index
    %c0_1 = arith.constant 0 : index
    %9 = vector.load %arg2[%8, %c0_1] : memref<128x32xf32, #tpu.memory_space<vmem>>, vector<1x32xf32>
    %10 = arith.index_cast %c1_i32 : i32 to index
    %c0_2 = arith.constant 0 : index
    %11 = vector.load %arg3[%10, %c0_2] : memref<16x32xf32, #tpu.memory_space<vmem>>, vector<1x32xf32>
    tpu.vector_store %arg3[%10, %c0_2], %9 {strides = array<i32>} : memref<16x32xf32, #tpu.memory_space<vmem>>, vector<1x32xf32>,
    %c2_i32 = arith.constant 2 : i32
    %12 = arith.index_cast %c2_i32 : i32 to index
    %13 = memref.load %arg1[%12] : memref<16xi32, #tpu.memory_space<smem>>
    %14 = arith.index_cast %13 : i32 to index
    %c0_3 = arith.constant 0 : index
    %15 = vector.load %arg2[%14, %c0_3] : memref<128x32xf32, #tpu.memory_space<vmem>>, vector<1x32xf32>
    %16 = arith.index_cast %c2_i32 : i32 to index
    %c0_4 = arith.constant 0 : index
    %17 = vector.load %arg3[%16, %c0_4] : memref<16x32xf32, #tpu.memory_space<vmem>>, vector<1x32xf32>
    tpu.vector_store %arg3[%16, %c0_4], %15 {strides = array<i32>} : memref<16x32xf32, #tpu.memory_space<vmem>>, vector<1x32xf32>,
    %c3_i32 = arith.constant 3 : i32
    %18 = arith.index_cast %c3_i32 : i32 to index
    %19 = memref.load %arg1[%18] : memref<16xi32, #tpu.memory_space<smem>>
    %20 = arith.index_cast %19 : i32 to index
    %c0_5 = arith.constant 0 : index
    %21 = vector.load %arg2[%20, %c0_5] : memref<128x32xf32, #tpu.memory_space<vmem>>, vector<1x32xf32>
    %22 = arith.index_cast %c3_i32 : i32 to index
    %c0_6 = arith.constant 0 : index
    %23 = vector.load %arg3[%22, %c0_6] : memref<16x32xf32, #tpu.memory_space<vmem>>, vector<1x32xf32>
    tpu.vector_store %arg3[%22, %c0_6], %21 {strides = array<i32>} : memref<16x32xf32, #tpu.memory_space<vmem>>, vector<1x32xf32>,
    %c4_i32 = arith.constant 4 : i32
    %24 = arith.index_cast %c4_i32 : i32 to index
    %25 = memref.load %arg1[%24] : memref<16xi32, #tpu.memory_space<smem>>
    %26 = arith.index_cast %25 : i32 to index
    %c0_7 = arith.constant 0 : index
    %27 = vector.load %arg2[%26, %c0_7] : memref<128x32xf32, #tpu.memory_space<vmem>>, vector<1x32xf32>
    %28 = arith.index_cast %c4_i32 : i32 to index
    %c0_8 = arith.constant 0 : index
    %29 = vector.load %arg3[%28, %c0_8] : memref<16x32xf32, #tpu.memory_space<vmem>>, vector<1x32xf32>
    tpu.vector_store %arg3[%28, %c0_8], %27 {strides = array<i32>} : memref<16x32xf32, #tpu.memory_space<vmem>>, vector<1x32xf32>,
    %c5_i32 = arith.constant 5 : i32
    %30 = arith.index_cast %c5_i32 : i32 to index
    %31 = memref.load %arg1[%30] : memref<16xi32, #tpu.memory_space<smem>>
    %32 = arith.index_cast %31 : i32 to index
    %c0_9 = arith.constant 0 : index
    %33 = vector.load %arg2[%32, %c0_9] : memref<128x32xf32, #tpu.memory_space<vmem>>, vector<1x32xf32>
    %34 = arith.index_cast %c5_i32 : i32 to index
    %c0_10 = arith.constant 0 : index
    %35 = vector.load %arg3[%34, %c0_10] : memref<16x32xf32, #tpu.memory_space<vmem>>, vector<1x32xf32>
    tpu.vector_store %arg3[%34, %c0_10], %33 {strides = array<i32>} : memref<16x32xf32, #tpu.memory_space<vmem>>, vector<1x32xf32>,
    %c6_i32 = arith.constant 6 : i32
    %36 = arith.index_cast %c6_i32 : i32 to index
    %37 = memref.load %arg1[%36] : memref<16xi32, #tpu.memory_space<smem>>
    %38 = arith.index_cast %37 : i32 to index
    %c0_11 = arith.constant 0 : index
    %39 = vector.load %arg2[%38, %c0_11] : memref<128x32xf32, #tpu.memory_space<vmem>>, vector<1x32xf32>
    %40 = arith.index_cast %c6_i32 : i32 to index
    %c0_12 = arith.constant 0 : index
    %41 = vector.load %arg3[%40, %c0_12] : memref<16x32xf32, #tpu.memory_space<vmem>>, vector<1x32xf32>
    tpu.vector_store %arg3[%40, %c0_12], %39 {strides = array<i32>} : memref<16x32xf32, #tpu.memory_space<vmem>>, vector<1x32xf32>,
    %c7_i32 = arith.constant 7 : i32
    %42 = arith.index_cast %c7_i32 : i32 to index
    %43 = memref.load %arg1[%42] : memref<16xi32, #tpu.memory_space<smem>>
    %44 = arith.index_cast %43 : i32 to index
    %c0_13 = arith.constant 0 : index
    %45 = vector.load %arg2[%44, %c0_13] : memref<128x32xf32, #tpu.memory_space<vmem>>, vector<1x32xf32>
    %46 = arith.index_cast %c7_i32 : i32 to index
    %c0_14 = arith.constant 0 : index
    %47 = vector.load %arg3[%46, %c0_14] : memref<16x32xf32, #tpu.memory_space<vmem>>, vector<1x32xf32>
    tpu.vector_store %arg3[%46, %c0_14], %45 {strides = array<i32>} : memref<16x32xf32, #tpu.memory_space<vmem>>, vector<1x32xf32>,
    %c8_i32 = arith.constant 8 : i32
    %48 = arith.index_cast %c8_i32 : i32 to index
    %49 = memref.load %arg1[%48] : memref<16xi32, #tpu.memory_space<smem>>
    %50 = arith.index_cast %49 : i32 to index
    %c0_15 = arith.constant 0 : index
    %51 = vector.load %arg2[%50, %c0_15] : memref<128x32xf32, #tpu.memory_space<vmem>>, vector<1x32xf32>
    %52 = arith.index_cast %c8_i32 : i32 to index
    %c0_16 = arith.constant 0 : index
    %53 = vector.load %arg3[%52, %c0_16] : memref<16x32xf32, #tpu.memory_space<vmem>>, vector<1x32xf32>
    tpu.vector_store %arg3[%52, %c0_16], %51 {strides = array<i32>} : memref<16x32xf32, #tpu.memory_space<vmem>>, vector<1x32xf32>,
    %c9_i32 = arith.constant 9 : i32
    %54 = arith.index_cast %c9_i32 : i32 to index
    %55 = memref.load %arg1[%54] : memref<16xi32, #tpu.memory_space<smem>>
    %56 = arith.index_cast %55 : i32 to index
    %c0_17 = arith.constant 0 : index
    %57 = vector.load %arg2[%56, %c0_17] : memref<128x32xf32, #tpu.memory_space<vmem>>, vector<1x32xf32>
    %58 = arith.index_cast %c9_i32 : i32 to index
    %c0_18 = arith.constant 0 : index
    %59 = vector.load %arg3[%58, %c0_18] : memref<16x32xf32, #tpu.memory_space<vmem>>, vector<1x32xf32>
    tpu.vector_store %arg3[%58, %c0_18], %57 {strides = array<i32>} : memref<16x32xf32, #tpu.memory_space<vmem>>, vector<1x32xf32>,
    %c10_i32 = arith.constant 10 : i32
    %60 = arith.index_cast %c10_i32 : i32 to index
    %61 = memref.load %arg1[%60] : memref<16xi32, #tpu.memory_space<smem>>
    %62 = arith.index_cast %61 : i32 to index
    %c0_19 = arith.constant 0 : index
    %63 = vector.load %arg2[%62, %c0_19] : memref<128x32xf32, #tpu.memory_space<vmem>>, vector<1x32xf32>
    %64 = arith.index_cast %c10_i32 : i32 to index
    %c0_20 = arith.constant 0 : index
    %65 = vector.load %arg3[%64, %c0_20] : memref<16x32xf32, #tpu.memory_space<vmem>>, vector<1x32xf32>
    tpu.vector_store %arg3[%64, %c0_20], %63 {strides = array<i32>} : memref<16x32xf32, #tpu.memory_space<vmem>>, vector<1x32xf32>,
    %c11_i32 = arith.constant 11 : i32
    %66 = arith.index_cast %c11_i32 : i32 to index
    %67 = memref.load %arg1[%66] : memref<16xi32, #tpu.memory_space<smem>>
    %68 = arith.index_cast %67 : i32 to index
    %c0_21 = arith.constant 0 : index
    %69 = vector.load %arg2[%68, %c0_21] : memref<128x32xf32, #tpu.memory_space<vmem>>, vector<1x32xf32>
    %70 = arith.index_cast %c11_i32 : i32 to index
    %c0_22 = arith.constant 0 : index
    %71 = vector.load %arg3[%70, %c0_22] : memref<16x32xf32, #tpu.memory_space<vmem>>, vector<1x32xf32>
    tpu.vector_store %arg3[%70, %c0_22], %69 {strides = array<i32>} : memref<16x32xf32, #tpu.memory_space<vmem>>, vector<1x32xf32>,
    %c12_i32 = arith.constant 12 : i32
    %72 = arith.index_cast %c12_i32 : i32 to index
    %73 = memref.load %arg1[%72] : memref<16xi32, #tpu.memory_space<smem>>
    %74 = arith.index_cast %73 : i32 to index
    %c0_23 = arith.constant 0 : index
    %75 = vector.load %arg2[%74, %c0_23] : memref<128x32xf32, #tpu.memory_space<vmem>>, vector<1x32xf32>
    %76 = arith.index_cast %c12_i32 : i32 to index
    %c0_24 = arith.constant 0 : index
    %77 = vector.load %arg3[%76, %c0_24] : memref<16x32xf32, #tpu.memory_space<vmem>>, vector<1x32xf32>
    tpu.vector_store %arg3[%76, %c0_24], %75 {strides = array<i32>} : memref<16x32xf32, #tpu.memory_space<vmem>>, vector<1x32xf32>,
    %c13_i32 = arith.constant 13 : i32
    %78 = arith.index_cast %c13_i32 : i32 to index
    %79 = memref.load %arg1[%78] : memref<16xi32, #tpu.memory_space<smem>>
    %80 = arith.index_cast %79 : i32 to index
    %c0_25 = arith.constant 0 : index
    %81 = vector.load %arg2[%80, %c0_25] : memref<128x32xf32, #tpu.memory_space<vmem>>, vector<1x32xf32>
    %82 = arith.index_cast %c13_i32 : i32 to index
    %c0_26 = arith.constant 0 : index
    %83 = vector.load %arg3[%82, %c0_26] : memref<16x32xf32, #tpu.memory_space<vmem>>, vector<1x32xf32>
    tpu.vector_store %arg3[%82, %c0_26], %81 {strides = array<i32>} : memref<16x32xf32, #tpu.memory_space<vmem>>, vector<1x32xf32>,
    %c14_i32 = arith.constant 14 : i32
    %84 = arith.index_cast %c14_i32 : i32 to index
    %85 = memref.load %arg1[%84] : memref<16xi32, #tpu.memory_space<smem>>
    %86 = arith.index_cast %85 : i32 to index
    %c0_27 = arith.constant 0 : index
    %87 = vector.load %arg2[%86, %c0_27] : memref<128x32xf32, #tpu.memory_space<vmem>>, vector<1x32xf32>
    %88 = arith.index_cast %c14_i32 : i32 to index
    %c0_28 = arith.constant 0 : index
    %89 = vector.load %arg3[%88, %c0_28] : memref<16x32xf32, #tpu.memory_space<vmem>>, vector<1x32xf32>
    tpu.vector_store %arg3[%88, %c0_28], %87 {strides = array<i32>} : memref<16x32xf32, #tpu.memory_space<vmem>>, vector<1x32xf32>,
    %c15_i32 = arith.constant 15 : i32
    %90 = arith.index_cast %c15_i32 : i32 to index
    %91 = memref.load %arg1[%90] : memref<16xi32, #tpu.memory_space<smem>>
    %92 = arith.index_cast %91 : i32 to index
    %c0_29 = arith.constant 0 : index
    %93 = vector.load %arg2[%92, %c0_29] : memref<128x32xf32, #tpu.memory_space<vmem>>, vector<1x32xf32>
    %94 = arith.index_cast %c15_i32 : i32 to index
    %c0_30 = arith.constant 0 : index
    %95 = vector.load %arg3[%94, %c0_30] : memref<16x32xf32, #tpu.memory_space<vmem>>, vector<1x32xf32>
    tpu.vector_store %arg3[%94, %c0_30], %93 {strides = array<i32>} : memref<16x32xf32, #tpu.memory_space<vmem>>, vector<1x32xf32>,
    %c16_i32 = arith.constant 16 : i32
    return
  }
  func.func @transform_0(%arg0: i32, %arg1: memref<16xi32, #tpu.memory_space<smem>>) -> (i32, i32) {
    %c0_i32 = arith.constant 0 : i32
    %c0_i32_0 = arith.constant 0 : i32
    %c0_i32_1 = arith.constant 0 : i32
    return %c0_i32, %c0_i32_0 : i32, i32
  }
  func.func @transform_1(%arg0: i32, %arg1: memref<16xi32, #tpu.memory_space<smem>>) -> (i32, i32) {
    %c0_i32 = arith.constant 0 : i32
    %c0_i32_0 = arith.constant 0 : i32
    %c0_i32_1 = arith.constant 0 : i32
    return %c0_i32, %c0_i32_0 : i32, i32
  }
}

</mosaic_0001>

<llo_original>
// kernel: parallel_embedding_forward.1
$region0: #{parallel_embedding_forward.1}
  #allocation0 [shape = 'u32[]', space=smem, size = 0x4, offset = 0x4, fixed_abs, tag = 'smem constant byte address 0x4 - core index']
  #allocation1 [shape = 'u32[144,128]{1,0:T(1,128)}', space=vmem, size = 0x12000, scoped, tag = 'internal scratch']
  #allocation2 [shape = 's32[1]{0}', space=sflag, size = 0x4, scoped, tag = 'scoped memory for parallel_embedding_forward.1']
  #allocation3 [shape = 'u8[512]{0}', space=smem, size = 0x200, scoped, tag = 'prefetched SMEM operand 0']
  %s0 = inlined_call_operand.vmem [shape: s32[16], index: 0, kind: input, shape index: {}]
  %s1 = inlined_call_operand.vmem [shape: f32[128,32], index: 1, kind: input, shape index: {}]
  %s2 = inlined_call_operand.hbm [shape: f32[16,32], index: 2, kind: output, shape index: {}]
  %s3 = sld [smem:[#allocation0]]
  $region14: #{parallel_embedding_forward.1} parent=0
    _
  %s5 = ssub.s32 1, %s3
  %s6 = scalar_select 0, %s5, %s3
  %s7 = sshll.u32 %s0, 4
  %s8 = int_to_ptr.vmem [resolvable:$true] %s7
  %10 = dma.vmem_to_smem %s8, 16, [#allocation3], [#allocation2]
  %11 = dma.done [#allocation2], 16
  %12 = sfence
  $region1: #{parallel_embedding_forward.1} parent=0
    #allocation4 [shape = 'u8[8192]{0}', space=vmem, size = 0x2000, scoped, tag = 'output window, operand 0, single buffered']
    #allocation5 [shape = 's32[1]{0}', space=sflag, size = 0x4, scoped, tag = 'scoped memory for parallel_embedding_forward.1']
    %13 = vsyncpa [#allocation5], 0
    // Predicated region
    $region2: #{parallel_embedding_forward.1} parent=1 // pred_check
      _
    $region3: #{parallel_embedding_forward.1} parent=1 // pred_check_branch
      %15 = sbr.rel (0) target = $region5
    $region4: #{parallel_embedding_forward.1} parent=1 // pred_region
      _
    $region5: #{parallel_embedding_forward.1} parent=1 // pred_fallthru
      _
    %s16 = sld [smem:[#allocation3]]
    %s17 = scalar_lea.vmem %s1, %s16
    %v18 = vld [vmem:[%s17] sm:$0x1]
    %vm19 = vcmask 253952
    %20 = vst.msk [vmem:[#allocation4] sm:$0x1] %vm19, %v18
    %s21 = sld [smem:[#allocation3 + $0x1]]
    %s22 = scalar_lea.vmem %s1, %s21
    %v23 = vld [vmem:[%s22] sm:$0x1]
    %24 = vst.msk [vmem:[#allocation4 + $0x1] sm:$0x1] %vm19, %v23
    %s25 = sld [smem:[#allocation3 + $0x2]]
    %s26 = scalar_lea.vmem %s1, %s25
    %v27 = vld [vmem:[%s26] sm:$0x1]
    %28 = vst.msk [vmem:[#allocation4 + $0x2] sm:$0x1] %vm19, %v27
    %s29 = sld [smem:[#allocation3 + $0x3]]
    %s30 = scalar_lea.vmem %s1, %s29
    %v31 = vld [vmem:[%s30] sm:$0x1]
    %32 = vst.msk [vmem:[#allocation4 + $0x3] sm:$0x1] %vm19, %v31
    %s33 = sld [smem:[#allocation3 + $0x4]]
    %s34 = scalar_lea.vmem %s1, %s33
    %v35 = vld [vmem:[%s34] sm:$0x1]
    %36 = vst.msk [vmem:[#allocation4 + $0x4] sm:$0x1] %vm19, %v35
    %s37 = sld [smem:[#allocation3 + $0x5]]
    %s38 = scalar_lea.vmem %s1, %s37
    %v39 = vld [vmem:[%s38] sm:$0x1]
    %40 = vst.msk [vmem:[#allocation4 + $0x5] sm:$0x1] %vm19, %v39
    %s41 = sld [smem:[#allocation3 + $0x6]]
    %s42 = scalar_lea.vmem %s1, %s41
    %v43 = vld [vmem:[%s42] sm:$0x1]
    %44 = vst.msk [vmem:[#allocation4 + $0x6] sm:$0x1] %vm19, %v43
    %s45 = sld [smem:[#allocation3 + $0x7]]
    %s46 = scalar_lea.vmem %s1, %s45
    %v47 = vld [vmem:[%s46] sm:$0x1]
    %48 = vst.msk [vmem:[#allocation4 + $0x7] sm:$0x1] %vm19, %v47
    %s49 = sld [smem:[#allocation3 + $0x8]]
    %s50 = scalar_lea.vmem %s1, %s49
    %v51 = vld [vmem:[%s50] sm:$0x1]
    %52 = vst.msk [vmem:[#allocation4 + $0x8] sm:$0x1] %vm19, %v51
    %s53 = sld [smem:[#allocation3 + $0x9]]
    %s54 = scalar_lea.vmem %s1, %s53
    %v55 = vld [vmem:[%s54] sm:$0x1]
    %56 = vst.msk [vmem:[#allocation4 + $0x9] sm:$0x1] %vm19, %v55
    %s57 = sld [smem:[#allocation3 + $0xa]]
    %s58 = scalar_lea.vmem %s1, %s57
    %v59 = vld [vmem:[%s58] sm:$0x1]
    %60 = vst.msk [vmem:[#allocation4 + $0xa] sm:$0x1] %vm19, %v59
    %s61 = sld [smem:[#allocation3 + $0xb]]
    %s62 = scalar_lea.vmem %s1, %s61
    %v63 = vld [vmem:[%s62] sm:$0x1]
    %64 = vst.msk [vmem:[#allocation4 + $0xb] sm:$0x1] %vm19, %v63
    %s65 = sld [smem:[#allocation3 + $0xc]]
    %s66 = scalar_lea.vmem %s1, %s65
    %v67 = vld [vmem:[%s66] sm:$0x1]
    %68 = vst.msk [vmem:[#allocation4 + $0xc] sm:$0x1] %vm19, %v67
    %s69 = sld [smem:[#allocation3 + $0xd]]
    %s70 = scalar_lea.vmem %s1, %s69
    %v71 = vld [vmem:[%s70] sm:$0x1]
    %72 = vst.msk [vmem:[#allocation4 + $0xd] sm:$0x1] %vm19, %v71
    %s73 = sld [smem:[#allocation3 + $0xe]]
    %s74 = scalar_lea.vmem %s1, %s73
    %v75 = vld [vmem:[%s74] sm:$0x1]
    %76 = vst.msk [vmem:[#allocation4 + $0xe] sm:$0x1] %vm19, %v75
    %s77 = sld [smem:[#allocation3 + $0xf]]
    %s78 = scalar_lea.vmem %s1, %s77
    %v79 = vld [vmem:[%s78] sm:$0x1]
    %80 = vst.msk [vmem:[#allocation4 + $0xf] sm:$0x1] %vm19, %v79
    // Predicated region
    $region6: #{parallel_embedding_forward.1} parent=1 // pred_check
      _
    $region7: #{parallel_embedding_forward.1} parent=1 // pred_check_branch
      %82 = sbr.rel (0) target = $region9
    $region8: #{parallel_embedding_forward.1} parent=1 // pred_region
      %s84 = ssub.s32 256, 256
      %85 = vsyncadd [#allocation5], %s84
      %s86 = sshll.u32 [#allocation4], 4
      %s87 = int_to_ptr.vmem [resolvable:$true] %s86
      %92 = dma.vmem_to_hbm [thread:$0]  %s87, 256, %s2, [#allocation5], 128, 128, 8
    $region9: #{parallel_embedding_forward.1} parent=1 // pred_fallthru
      _
    // Predicated region
    $region10: #{parallel_embedding_forward.1} parent=1 // pred_check
      _
    $region11: #{parallel_embedding_forward.1} parent=1 // pred_check_branch
      %94 = sbr.rel (0) target = $region13
    $region12: #{parallel_embedding_forward.1} parent=1 // pred_region
      %95 = dma.done [#allocation5], 256
    $region13: #{parallel_embedding_forward.1} parent=1 // pred_fallthru
      _
    %96 = vsyncpa [#allocation5], 1

</llo_original>
